<compile_context>
chip_gen: v5e
topology: v5e:2x2
jax: 0.10.0
libtpu: 0.0.40
codegen_flags: <defaults>
</compile_context>

<pallas_src>
import jax
import jax.numpy as jnp
from jax.experimental import pallas as pl
from jax.experimental.pallas import tpu as pltpu


def _round_up(x, m):
    return ((x + m - 1) // m) * m


def _make_dense_kernel(n_layers: int, non_lin: str, mxu_dtype):
    """Fused MLP kernel: (n_layers-1) hidden layers (+nonlin) and one final linear layer."""

    def kernel(x_ref, *refs):
        # refs = (w0, b0, w1, b1, ..., w_last, b_last, out_ref)
        o_ref = refs[-1]
        params = refs[:-1]

        h = x_ref[...].astype(jnp.float32)
        for l in range(n_layers):
            w = params[2 * l][...]                   # already mxu_dtype (bf16)
            b = params[2 * l + 1][...]               # (1, d_out) f32 -> broadcasts over rows
            h = jnp.dot(h.astype(mxu_dtype), w,
                        preferred_element_type=jnp.float32) + b
            if l < n_layers - 1:                     # final layer is always linear
                if non_lin == "Sigmoid":
                    # One EUP tanh + cheap VPU mul/add instead of exp + reciprocal.
                    h = 0.5 * jnp.tanh(0.5 * h) + 0.5
                elif non_lin == "ReLU":
                    h = jnp.maximum(h, 0.0)
                else:
                    raise ValueError(f"Unsupported non-linear op: {non_lin}")
        o_ref[...] = h.astype(o_ref.dtype)

    return kernel


def dense_nn_forward(x, params, non_lin: str = "Sigmoid", mxu_dtype=jnp.bfloat16):
    """Pallas forward of DenseNN.

    x:      (B, in_dim) float array.
    params: list of (W, b) pairs; W has shape (d_in, d_out), b has shape (1, d_out) or
            (d_out,). The last pair is the final linear layer (no non-linearity after it).
    """
    B, in_dim = x.shape
    n_layers = len(params)
    out_dim = params[-1][0].shape[1]

    # ---- Prepare parameters --------------------------------------------------
    # Weights -> bf16 (MXU-native, half the HBM->VMEM DMA bytes); biases stay f32.
    # Final layer zero-padded to a multiple of 128 output lanes for dense, unmasked stores.
    out_pad = _round_up(out_dim, 128)
    prepped = []
    for l, (w, b) in enumerate(params):
        w = jnp.asarray(w).astype(mxu_dtype)
        b = jnp.asarray(b, dtype=jnp.float32).reshape(1, -1)
        if l == n_layers - 1 and out_pad != out_dim:
            w = jnp.pad(w, ((0, 0), (0, out_pad - out_dim)))
            b = jnp.pad(b, ((0, 0), (0, out_pad - out_dim)))
        prepped.append((w, b))
    flat_params = [p for wb in prepped for p in wb]

    # ---- VMEM budgeting / batch-tile selection --------------------------------
    resident_bytes = sum(int(p.size) * p.dtype.itemsize for p in flat_params)  # 1-buffered
    layer_dims = [in_dim] + [w.shape[1] for w, _ in prepped]
    max_dim = max(layer_dims)
    x_bytes = x.dtype.itemsize
    # Per-row cost: double-buffered x tile + double-buffered out tile
    # + ~3 live f32 activation rows of the widest layer (compiler scratch).
    per_row_bytes = 2 * in_dim * x_bytes + 2 * out_pad * x_bytes + 3 * max_dim * 4

    try:
        vmem_cap = int(pltpu.get_tpu_info().vmem_capacity_bytes)
    except Exception:
        vmem_cap = 64 << 20                               # conservative (v7x per-core VMEM)
    vmem_limit = min((vmem_cap * 3) // 4, 100 << 20)      # ~48 MiB on v7x, ~96 MiB on v5e/v6e
    budget = (vmem_limit * 4) // 5

    # TODO(synk): if resident weights do not fit the budget (very wide layers), tile the
    # contraction dim with a reduction grid axis + f32 VMEM accumulator instead of keeping
    # every W fully resident.
    tb_cap = (budget - resident_bytes) // per_row_bytes
    tb_cap = max(8, (tb_cap // 8) * 8)
    tb_cap = min(tb_cap, 1024)     # large tiles amortize the ~0.35us per-grid-step overhead

    if B <= 8:
        tb = B                                            # single full-extent tile (legal)
    else:
        # >= 2 balanced tiles so both v7x TensorCores get work; avoids 512+tiny-tail splits.
        n_tiles = max(2, pl.cdiv(B, tb_cap))
        tb = min(tb_cap, _round_up(pl.cdiv(B, n_tiles), 8))
    grid = (pl.cdiv(B, tb),)

    # ---- Specs -----------------------------------------------------------------
    in_specs = [pl.BlockSpec((tb, in_dim), lambda i: (i, 0))]
    for p in flat_params:
        # Weights / biases: full-extent blocks, constant index_map (resident across all
        # batch tiles); single-buffered since they never change between grid steps.
        in_specs.append(
            pl.BlockSpec(p.shape, lambda i: (0, 0), pipeline_mode=pl.Buffered(1)))
    out_spec = pl.BlockSpec((tb, out_pad), lambda i: (i, 0))

    kernel = _make_dense_kernel(n_layers, non_lin, mxu_dtype)

    out = pl.pallas_call(
        kernel,
        out_shape=jax.ShapeDtypeStruct((B, out_pad), x.dtype),
        grid_spec=pltpu.PrefetchScalarGridSpec(
            num_scalar_prefetch=0,
            grid=grid,
            in_specs=in_specs,
            out_specs=out_spec,
        ),
        compiler_params=pltpu.CompilerParams(
            dimension_semantics=("parallel",),
            vmem_limit_bytes=int(vmem_limit),
        ),
    )(x, *flat_params)

    return out[:, :out_dim] if out_pad != out_dim else out


def _reference_forward(x, params, non_lin="Sigmoid", mxu_dtype=jnp.bfloat16):
    """Pure-JAX reference matching the PyTorch forward (same bf16 dot operands as kernel)."""
    h = x.astype(jnp.float32)
    for w, b in params[:-1]:
        h = jnp.dot(h.astype(mxu_dtype), w.astype(mxu_dtype),
                    preferred_element_type=jnp.float32) + b.reshape(1, -1)
        h = jax.nn.sigmoid(h) if non_lin == "Sigmoid" else jnp.maximum(h, 0.0)
    w, b = params[-1]
    return jnp.dot(h.astype(mxu_dtype), w.astype(mxu_dtype),
                   preferred_element_type=jnp.float32) + b.reshape(1, -1)


if __name__ == "__main__":
    key = jax.random.PRNGKey(0)

    # DenseNN(in_dim=32, out_dim=16, fc_dim_list=[64, 48])
    in_dim, out_dim = 32, 16
    fc_dim_list = [64, 48]
    dims = [in_dim] + list(fc_dim_list) + [out_dim]
    n_layers = len(dims) - 1
    keys = jax.random.split(key, 2 * n_layers + 2)

    params = []
    ki = 0
    for d_in, d_out in zip(dims[:-1], dims[1:]):
        bound = 1.0 / (d_in ** 0.5)
        w = jax.random.uniform(keys[ki], (d_in, d_out), jnp.float32, -bound, bound)
        ki += 1
        b = jax.random.uniform(keys[ki], (1, d_out), jnp.float32, -bound, bound)
        ki += 1
        params.append((w, b))

    # Case 1: small batch (single full-extent tile), Sigmoid.
    x_small = jax.random.normal(keys[ki], (8, in_dim), dtype=jnp.float32)
    y = dense_nn_forward(x_small, params, non_lin="Sigmoid")
    jax.block_until_ready(y)
    y_ref = _reference_forward(x_small, params, non_lin="Sigmoid")
    assert y.shape == (8, out_dim)
    assert y.dtype == x_small.dtype
    assert bool(jnp.allclose(y, y_ref, atol=2e-3, rtol=2e-3))

    # Case 2: ragged batch (two balanced tiles + padded tail), ReLU.
    x_big = jax.random.normal(keys[ki + 1], (40, in_dim), dtype=jnp.float32)
    y2 = dense_nn_forward(x_big, params, non_lin="ReLU")
    jax.block_until_ready(y2)
    y2_ref = _reference_forward(x_big, params, non_lin="ReLU")
    assert y2.shape == (40, out_dim)
    assert y2.dtype == x_big.dtype
    assert bool(jnp.allclose(y2, y2_ref, atol=2e-3, rtol=2e-3))

    print("KERNEL_OK")
</pallas_src>

<mosaic_0001>
module attributes {stable_mosaic.version = 11 : i64} {
  func.func @kernel(%arg0: i32, %arg1: memref<8x32xf32, #tpu.memory_space<vmem>>, %arg2: memref<32x64xbf16, #tpu.memory_space<vmem>>, %arg3: memref<1x64xf32, #tpu.memory_space<vmem>>, %arg4: memref<64x48xbf16, #tpu.memory_space<vmem>>, %arg5: memref<1x48xf32, #tpu.memory_space<vmem>>, %arg6: memref<48x128xbf16, #tpu.memory_space<vmem>>, %arg7: memref<1x128xf32, #tpu.memory_space<vmem>>, %arg8: memref<8x128xf32, #tpu.memory_space<vmem>>) attributes {dimension_semantics = [#tpu.dimension_semantics<parallel>], iteration_bounds = array<i64: 1>, scalar_prefetch = 0 : i64, scratch_operands = 0 : i64, tpu.core_type = #tpu.core_type<tc>, window_params = [{transform_indices = @transform_0, window_bounds = array<i64: 8, 32>}, {pipeline_mode = #tpu.pipeline_mode<synchronous>, transform_indices = @transform_1, window_bounds = array<i64: 32, 64>}, {pipeline_mode = #tpu.pipeline_mode<synchronous>, transform_indices = @transform_2, window_bounds = array<i64: 1, 64>}, {pipeline_mode = #tpu.pipeline_mode<synchronous>, transform_indices = @transform_3, window_bounds = array<i64: 64, 48>}, {pipeline_mode = #tpu.pipeline_mode<synchronous>, transform_indices = @transform_4, window_bounds = array<i64: 1, 48>}, {pipeline_mode = #tpu.pipeline_mode<synchronous>, transform_indices = @transform_5, window_bounds = array<i64: 48, 128>}, {pipeline_mode = #tpu.pipeline_mode<synchronous>, transform_indices = @transform_6, window_bounds = array<i64: 1, 128>}, {transform_indices = @transform_7, window_bounds = array<i64: 8, 128>}]} {
    %c0 = arith.constant 0 : index
    %c0_0 = arith.constant 0 : index
    %0 = vector.load %arg1[%c0, %c0_0] : memref<8x32xf32, #tpu.memory_space<vmem>>, vector<8x32xf32>
    %c0_1 = arith.constant 0 : index
    %c0_2 = arith.constant 0 : index
    %1 = vector.load %arg2[%c0_1, %c0_2] : memref<32x64xbf16, #tpu.memory_space<vmem>>, vector<32x64xbf16>
    %c0_3 = arith.constant 0 : index
    %c0_4 = arith.constant 0 : index
    %2 = vector.load %arg3[%c0_3, %c0_4] : memref<1x64xf32, #tpu.memory_space<vmem>>, vector<1x64xf32>
    %3 = arith.truncf %0 : vector<8x32xf32> to vector<8x32xbf16>
    %cst = arith.constant dense<0.000000e+00> : vector<8x64xf32>
    %4 = tpu.matmul %3, %1, %cst {dimension_numbers = #tpu.dot_dimension_numbers<[1], [0], [0], [1], [0, 0, 1, 1], [], []>} : vector<8x32xbf16>, vector<32x64xbf16>, vector<8x64xf32> -> vector<8x64xf32>
    %5 = vector.broadcast %2 : vector<1x64xf32> to vector<8x64xf32>
    %6 = arith.addf %4, %5 : vector<8x64xf32>
    %cst_5 = arith.constant 5.000000e-01 : f32
    %7 = vector.broadcast %cst_5 : f32 to vector<8x64xf32>
    %8 = arith.mulf %7, %6 : vector<8x64xf32>
    %9 = math.tanh %8 : vector<8x64xf32>
    %cst_6 = arith.constant 5.000000e-01 : f32
    %10 = vector.broadcast %cst_6 : f32 to vector<8x64xf32>
    %11 = arith.mulf %10, %9 : vector<8x64xf32>
    %cst_7 = arith.constant 5.000000e-01 : f32
    %12 = vector.broadcast %cst_7 : f32 to vector<8x64xf32>
    %13 = arith.addf %11, %12 : vector<8x64xf32>
    %c0_8 = arith.constant 0 : index
    %c0_9 = arith.constant 0 : index
    %14 = vector.load %arg4[%c0_8, %c0_9] : memref<64x48xbf16, #tpu.memory_space<vmem>>, vector<64x48xbf16>
    %c0_10 = arith.constant 0 : index
    %c0_11 = arith.constant 0 : index
    %15 = vector.load %arg5[%c0_10, %c0_11] : memref<1x48xf32, #tpu.memory_space<vmem>>, vector<1x48xf32>
    %16 = arith.truncf %13 : vector<8x64xf32> to vector<8x64xbf16>
    %cst_12 = arith.constant dense<0.000000e+00> : vector<8x48xf32>
    %17 = tpu.matmul %16, %14, %cst_12 {dimension_numbers = #tpu.dot_dimension_numbers<[1], [0], [0], [1], [0, 0, 1, 1], [], []>} : vector<8x64xbf16>, vector<64x48xbf16>, vector<8x48xf32> -> vector<8x48xf32>
    %18 = vector.broadcast %15 : vector<1x48xf32> to vector<8x48xf32>
    %19 = arith.addf %17, %18 : vector<8x48xf32>
    %cst_13 = arith.constant 5.000000e-01 : f32
    %20 = vector.broadcast %cst_13 : f32 to vector<8x48xf32>
    %21 = arith.mulf %20, %19 : vector<8x48xf32>
    %22 = math.tanh %21 : vector<8x48xf32>
    %cst_14 = arith.constant 5.000000e-01 : f32
    %23 = vector.broadcast %cst_14 : f32 to vector<8x48xf32>
    %24 = arith.mulf %23, %22 : vector<8x48xf32>
    %cst_15 = arith.constant 5.000000e-01 : f32
    %25 = vector.broadcast %cst_15 : f32 to vector<8x48xf32>
    %26 = arith.addf %24, %25 : vector<8x48xf32>
    %c0_16 = arith.constant 0 : index
    %c0_17 = arith.constant 0 : index
    %27 = vector.load %arg6[%c0_16, %c0_17] : memref<48x128xbf16, #tpu.memory_space<vmem>>, vector<48x128xbf16>
    %c0_18 = arith.constant 0 : index
    %c0_19 = arith.constant 0 : index
    %28 = vector.load %arg7[%c0_18, %c0_19] : memref<1x128xf32, #tpu.memory_space<vmem>>, vector<1x128xf32>
    %29 = arith.truncf %26 : vector<8x48xf32> to vector<8x48xbf16>
    %cst_20 = arith.constant dense<0.000000e+00> : vector<8x128xf32>
    %30 = tpu.matmul %29, %27, %cst_20 {dimension_numbers = #tpu.dot_dimension_numbers<[1], [0], [0], [1], [0, 0, 1, 1], [], []>} : vector<8x48xbf16>, vector<48x128xbf16>, vector<8x128xf32> -> vector<8x128xf32>
    %31 = vector.broadcast %28 : vector<1x128xf32> to vector<8x128xf32>
    %32 = arith.addf %30, %31 : vector<8x128xf32>
    %c0_21 = arith.constant 0 : index
    %c0_22 = arith.constant 0 : index
    %33 = vector.load %arg8[%c0_21, %c0_22] : memref<8x128xf32, #tpu.memory_space<vmem>>, vector<8x128xf32>
    tpu.vector_store %arg8[%c0_21, %c0_22], %32 {strides = array<i32>} : memref<8x128xf32, #tpu.memory_space<vmem>>, vector<8x128xf32>,
    return
  }
  func.func @transform_0(%arg0: i32) -> (i32, i32) {
    %c0_i32 = arith.constant 0 : i32
    %c0_i32_0 = arith.constant 0 : i32
    return %arg0, %c0_i32 : i32, i32
  }
  func.func @transform_1(%arg0: i32) -> (i32, i32) {
    %c0_i32 = arith.constant 0 : i32
    %c0_i32_0 = arith.constant 0 : i32
    %c0_i32_1 = arith.constant 0 : i32
    return %c0_i32, %c0_i32_0 : i32, i32
  }
  func.func @transform_2(%arg0: i32) -> (i32, i32) {
    %c0_i32 = arith.constant 0 : i32
    %c0_i32_0 = arith.constant 0 : i32
    %c0_i32_1 = arith.constant 0 : i32
    return %c0_i32, %c0_i32_0 : i32, i32
  }
  func.func @transform_3(%arg0: i32) -> (i32, i32) {
    %c0_i32 = arith.constant 0 : i32
    %c0_i32_0 = arith.constant 0 : i32
    %c0_i32_1 = arith.constant 0 : i32
    return %c0_i32, %c0_i32_0 : i32, i32
  }
  func.func @transform_4(%arg0: i32) -> (i32, i32) {
    %c0_i32 = arith.constant 0 : i32
    %c0_i32_0 = arith.constant 0 : i32
    %c0_i32_1 = arith.constant 0 : i32
    return %c0_i32, %c0_i32_0 : i32, i32
  }
  func.func @transform_5(%arg0: i32) -> (i32, i32) {
    %c0_i32 = arith.constant 0 : i32
    %c0_i32_0 = arith.constant 0 : i32
    %c0_i32_1 = arith.constant 0 : i32
    return %c0_i32, %c0_i32_0 : i32, i32
  }
  func.func @transform_6(%arg0: i32) -> (i32, i32) {
    %c0_i32 = arith.constant 0 : i32
    %c0_i32_0 = arith.constant 0 : i32
    %c0_i32_1 = arith.constant 0 : i32
    return %c0_i32, %c0_i32_0 : i32, i32
  }
  func.func @transform_7(%arg0: i32) -> (i32, i32) {
    %c0_i32 = arith.constant 0 : i32
    %c0_i32_0 = arith.constant 0 : i32
    return %arg0, %c0_i32 : i32, i32
  }
}

</mosaic_0001>

<llo_original>
// kernel: tpu_custom_call.1
$region0: #{tpu_custom_call.1}
  #allocation0 [shape = 'u32[]', space=smem, size = 0x4, offset = 0x4, fixed_abs, tag = 'smem constant byte address 0x4 - core index']
  #allocation1 [shape = 'u32[72,128]{1,0:T(1,128)}', space=vmem, size = 0x9000, scoped, tag = 'internal scratch']
  %s0 = inlined_call_operand.vmem [shape: f32[8,32], index: 0, kind: input, shape index: {}]
  %s1 = inlined_call_operand.vmem [shape: bf16[32,64], index: 1, kind: input, shape index: {}]
  %s2 = inlined_call_operand.vmem [shape: f32[1,64], index: 2, kind: input, shape index: {}]
  %s3 = inlined_call_operand.vmem [shape: bf16[64,48], index: 3, kind: input, shape index: {}]
  %s4 = inlined_call_operand.vmem [shape: f32[1,48], index: 4, kind: input, shape index: {}]
  %s5 = inlined_call_operand.vmem [shape: bf16[48,128], index: 5, kind: input, shape index: {}]
  %s6 = inlined_call_operand.vmem [shape: f32[1,128], index: 6, kind: input, shape index: {}]
  %s7 = inlined_call_operand.hbm [shape: f32[8,128], index: 7, kind: output, shape index: {}]
  %s8 = sld [smem:[#allocation0]]
  $region38: #{tpu_custom_call.1} parent=0
    _
  %s10 = ssub.s32 1, %s8
  %s11 = scalar_select 0, %s10, %s8
  $region1: #{tpu_custom_call.1} parent=0
    #allocation2 [shape = 'u8[4096]{0}', space=vmem, size = 0x1000, scoped, tag = 'output window, operand 0, single buffered']
    #allocation3 [shape = 's32[1]{0}', space=sflag, size = 0x4, scoped, tag = 'scoped memory for tpu_custom_call.1']
    %12 = vsyncpa [#allocation3], 0
    // Predicated region
    $region2: #{tpu_custom_call.1} parent=1 // pred_check
      _
    $region3: #{tpu_custom_call.1} parent=1 // pred_check_branch
      %14 = sbr.rel (0) target = $region5
    $region4: #{tpu_custom_call.1} parent=1 // pred_region
      _
    $region5: #{tpu_custom_call.1} parent=1 // pred_fallthru
      _
    // Predicated region
    $region6: #{tpu_custom_call.1} parent=1 // pred_check
      _
    $region7: #{tpu_custom_call.1} parent=1 // pred_check_branch
      %16 = sbr.rel (0) target = $region9
    $region8: #{tpu_custom_call.1} parent=1 // pred_region
      _
    $region9: #{tpu_custom_call.1} parent=1 // pred_fallthru
      _
    // Predicated region
    $region10: #{tpu_custom_call.1} parent=1 // pred_check
      _
    $region11: #{tpu_custom_call.1} parent=1 // pred_check_branch
      %18 = sbr.rel (0) target = $region13
    $region12: #{tpu_custom_call.1} parent=1 // pred_region
      _
    $region13: #{tpu_custom_call.1} parent=1 // pred_fallthru
      _
    // Predicated region
    $region14: #{tpu_custom_call.1} parent=1 // pred_check
      _
    $region15: #{tpu_custom_call.1} parent=1 // pred_check_branch
      %20 = sbr.rel (0) target = $region17
    $region16: #{tpu_custom_call.1} parent=1 // pred_region
      _
    $region17: #{tpu_custom_call.1} parent=1 // pred_fallthru
      _
    // Predicated region
    $region18: #{tpu_custom_call.1} parent=1 // pred_check
      _
    $region19: #{tpu_custom_call.1} parent=1 // pred_check_branch
      %22 = sbr.rel (0) target = $region21
    $region20: #{tpu_custom_call.1} parent=1 // pred_region
      _
    $region21: #{tpu_custom_call.1} parent=1 // pred_fallthru
      _
    // Predicated region
    $region22: #{tpu_custom_call.1} parent=1 // pred_check
      _
    $region23: #{tpu_custom_call.1} parent=1 // pred_check_branch
      %24 = sbr.rel (0) target = $region25
    $region24: #{tpu_custom_call.1} parent=1 // pred_region
      _
    $region25: #{tpu_custom_call.1} parent=1 // pred_fallthru
      _
    // Predicated region
    $region26: #{tpu_custom_call.1} parent=1 // pred_check
      _
    $region27: #{tpu_custom_call.1} parent=1 // pred_check_branch
      %26 = sbr.rel (0) target = $region29
    $region28: #{tpu_custom_call.1} parent=1 // pred_region
      _
    $region29: #{tpu_custom_call.1} parent=1 // pred_fallthru
      _
    %v28 = vld [vmem:[%s0] sm:$0xff]
    %v29 = vld [vmem:[%s1] sm:$0xf]
    %v30 = vld [vmem:[%s1 + $0x4] sm:$0xf]
    %v31 = vld [vmem:[%s1 + $0x8] sm:$0xf]
    %v32 = vld [vmem:[%s1 + $0xc] sm:$0xf]
    %v33 = vld [vmem:[%s2] sm:$0x1]
    %v34 = vpack.c.bf16 %v28, %v28
    %v36 = vperm.slane %v33, 0
    %v42 = vunpack.c.l.b16 %v29
    %v43 = vunpack.c.l.b16 %v30
    %v44 = vunpack.c.l.b16 %v31
    %v45 = vunpack.c.l.b16 %v32
    %v46 = vpack.c.b16 %v43, %v42
    %v47 = vpack.c.b16 %v45, %v44
    %vm50 = vcmask 261120
    %v52 = vsel %vm50, %v34, 0
    %54 = vmatpush.bf16.msra.mxu0 0
    %55 = vmatpush.bf16.msra.mxu0 0
    %56 = vmatpush.bf16.msra.mxu0 0
    %57 = vmatpush.bf16.msra.mxu0 0
    %58 = vmatpush.bf16.msra.mxu0 0
    %59 = vmatpush.bf16.msra.mxu0 0
    %60 = vmatpush.bf16.msra.mxu0 %v47
    %61 = vmatpush.bf16.msra.mxu0 %v46
    %62 = vmatmul.bf16.gmra.mxu0 %v52
    %v63 = vpop.f32.mrf.mxu0
    %v64 = vadd.f32 %v36, %v63
    %v65 = vpop.f32.mrf.mxu0
    %66 = vdwg.mxu0
    %v67 = vmul.f32 %v64, 0.5
    %v68 = vtanh.pop %v67
    %v69 = vmul.f32 %v68, 0.5
    %v70 = vadd.f32 %v69, 0.5
    %v71 = vld [vmem:[%s3] sm:$0xf]
    %v72 = vld [vmem:[%s3 + $0x4] sm:$0xf]
    %v73 = vld [vmem:[%s3 + $0x8] sm:$0xf]
    %v74 = vld [vmem:[%s3 + $0xc] sm:$0xf]
    %v75 = vld [vmem:[%s3 + $0x10] sm:$0xf]
    %v76 = vld [vmem:[%s3 + $0x14] sm:$0xf]
    %v77 = vld [vmem:[%s3 + $0x18] sm:$0xf]
    %v78 = vld [vmem:[%s3 + $0x1c] sm:$0xf]
    %v79 = vld [vmem:[%s4] sm:$0x1]
    %v80 = vpack.c.bf16 %v70, %v70
    %v82 = vperm.slane %v79, 0
    %v92 = vunpack.c.l.b16 %v71
    %v93 = vunpack.c.l.b16 %v72
    %v94 = vunpack.c.l.b16 %v73
    %v95 = vunpack.c.l.b16 %v74
    %v96 = vunpack.c.l.b16 %v75
    %v97 = vunpack.c.l.b16 %v76
    %v98 = vunpack.c.l.b16 %v77
    %v99 = vunpack.c.l.b16 %v78
    %v100 = vpack.c.b16 %v93, %v92
    %v101 = vpack.c.b16 %v95, %v94
    %v102 = vpack.c.b16 %v97, %v96
    %v103 = vpack.c.b16 %v99, %v98
    %vm108 = vcmask 523264
    %v110 = vsel %vm108, %v80, 0
    %112 = vmatpush.bf16.msra.mxu0 0
    %113 = vmatpush.bf16.msra.mxu0 0
    %114 = vmatpush.bf16.msra.mxu0 0
    %115 = vmatpush.bf16.msra.mxu0 0
    %116 = vmatpush.bf16.msra.mxu0 %v103
    %117 = vmatpush.bf16.msra.mxu0 %v102
    %118 = vmatpush.bf16.msra.mxu0 %v101
    %119 = vmatpush.bf16.msra.mxu0 %v100
    %120 = vmatmul.bf16.gmra.mxu0 %v110
    %v121 = vpop.f32.mrf.mxu0
    %v122 = vadd.f32 %v82, %v121
    %v123 = vpop.f32.mrf.mxu0
    %124 = vdwg.mxu0
    %v125 = vmul.f32 %v122, 0.5
    %v126 = vtanh.pop %v125
    %v127 = vmul.f32 %v126, 0.5
    %v128 = vadd.f32 %v127, 0.5
    %v129 = vld [vmem:[%s5] sm:$0xf]
    %v130 = vld [vmem:[%s5 + $0x4] sm:$0xf]
    %v131 = vld [vmem:[%s5 + $0x8] sm:$0xf]
    %v132 = vld [vmem:[%s5 + $0xc] sm:$0xf]
    %v133 = vld [vmem:[%s5 + $0x10] sm:$0xf]
    %v134 = vld [vmem:[%s5 + $0x14] sm:$0xf]
    %v135 = vld [vmem:[%s6] sm:$0x1]
    %v136 = vpack.c.bf16 %v128, %v128
    %v138 = vperm.slane %v135, 0
    %v146 = vunpack.c.l.b16 %v129
    %v147 = vunpack.c.l.b16 %v130
    %v148 = vunpack.c.l.b16 %v131
    %v149 = vunpack.c.l.b16 %v132
    %v150 = vunpack.c.l.b16 %v133
    %v151 = vunpack.c.l.b16 %v134
    %v152 = vpack.c.b16 %v147, %v146
    %v153 = vpack.c.b16 %v149, %v148
    %v154 = vpack.c.b16 %v151, %v150
    %vm158 = vcmask 392192
    %v160 = vsel %vm158, %v136, 0
    %162 = vmatpush.bf16.msra.mxu0 0
    %163 = vmatpush.bf16.msra.mxu0 0
    %164 = vmatpush.bf16.msra.mxu0 0
    %165 = vmatpush.bf16.msra.mxu0 0
    %166 = vmatpush.bf16.msra.mxu0 0
    %167 = vmatpush.bf16.msra.mxu0 %v154
    %168 = vmatpush.bf16.msra.mxu0 %v153
    %169 = vmatpush.bf16.msra.mxu0 %v152
    %170 = vmatmul.bf16.gmra.mxu0 %v160
    %v171 = vpop.f32.mrf.mxu0
    %v172 = vadd.f32 %v138, %v171
    %v173 = vpop.f32.mrf.mxu0
    %174 = vdwg.mxu0
    %175 = vst [vmem:[#allocation2] sm:$0xff] %v172
    // Predicated region
    $region30: #{tpu_custom_call.1} parent=1 // pred_check
      _
    $region31: #{tpu_custom_call.1} parent=1 // pred_check_branch
      %177 = sbr.rel (0) target = $region33
    $region32: #{tpu_custom_call.1} parent=1 // pred_region
      %179 = vsyncadd [#allocation3], 0
      %s181 = sshll.u32 [#allocation2], 4
      %s182 = int_to_ptr.vmem [resolvable:$true] %s181
      %s183 = sshll.u32 %s7, 4
      %s184 = int_to_ptr.hbm [resolvable:$true] %s183
      %186 = dma.vmem_to_hbm [thread:$0]  %s182, 128, %s184, [#allocation3]
    $region33: #{tpu_custom_call.1} parent=1 // pred_fallthru
      _
    // Predicated region
    $region34: #{tpu_custom_call.1} parent=1 // pred_check
      _
    $region35: #{tpu_custom_call.1} parent=1 // pred_check_branch
      %188 = sbr.rel (0) target = $region37
    $region36: #{tpu_custom_call.1} parent=1 // pred_region
      %190 = dma.done [#allocation3], 128
    $region37: #{tpu_custom_call.1} parent=1 // pred_fallthru
      _
    %191 = vsyncpa [#allocation3], 1

</llo_original>
